<compile_context>
chip_gen: v5e
topology: v5e:2x2
jax: 0.10.0
libtpu: 0.0.40
codegen_flags: <defaults>
</compile_context>

<pallas_src>
import functools

import jax
import jax.numpy as jnp
from jax.experimental import pallas as pl
from jax.experimental.pallas import tpu as pltpu


def _round_up(x: int, n: int) -> int:
    return ((x + n - 1) // n) * n


def _sublane(dtype) -> int:
    # Minimum second-minor packing for a (sublane, 128) tile of this dtype.
    return max(8, 32 // jnp.dtype(dtype).itemsize)


def _angle_resnet_block_kernel(a_ref, w1_ref, b1_ref, w2_ref, b2_ref, o_ref,
                               *, mxu_dtype):
    """Fused: out = s + W2.relu(W1.relu(s) + b1) + b2  (per [TM, PC] tile)."""
    s = a_ref[...].astype(jnp.float32)                         # residual (f32)
    x = jnp.maximum(s, 0.0)                                    # ReLU
    x = jnp.dot(x.astype(mxu_dtype), w1_ref[...],
                preferred_element_type=jnp.float32) + b1_ref[...]   # linear_1
    x = jnp.maximum(x, 0.0)                                    # ReLU
    x = jnp.dot(x.astype(mxu_dtype), w2_ref[...],
                preferred_element_type=jnp.float32) + b2_ref[...]   # linear_2
    o_ref[...] = (x + s).astype(o_ref.dtype)                   # + residual


def pack_angle_resnet_params(w1, b1, w2, b2, *, mxu_dtype=jnp.bfloat16):
    """Build lane-packed, block-diagonal parameters once (reusable per call)."""
    c = w1.shape[0]
    p = 128 // c if (c < 128 and 128 % c == 0) else 1
    pc = p * c
    eye_p = jnp.eye(p, dtype=jnp.float32)
    # PyTorch Linear: y = x @ W.T + b.  P copies of W^T on the diagonal.
    w1_bd = jnp.kron(eye_p, w1.T.astype(jnp.float32)).astype(mxu_dtype)   # [PC,PC]
    w2_bd = jnp.kron(eye_p, w2.T.astype(jnp.float32)).astype(mxu_dtype)   # [PC,PC]
    b1_bd = jnp.tile(b1.astype(jnp.float32).reshape(1, c), (1, p))        # [1,PC]
    b2_bd = jnp.tile(b2.astype(jnp.float32).reshape(1, c), (1, p))        # [1,PC]
    return (c, p, pc, mxu_dtype, w1_bd, b1_bd, w2_bd, b2_bd)


def _apply_packed(a, packed, *, tile_m=4096):
    c, p, pc, mxu_dtype, w1_bd, b1_bd, w2_bd, b2_bd = packed
    orig_shape = a.shape
    assert orig_shape[-1] == c, "last dim must equal c_hidden"
    dtype = a.dtype
    itemsize = jnp.dtype(dtype).itemsize

    a2d = a.reshape(-1, c)
    m = a2d.shape[0]

    # Lane packing.  Only pad when M is not a multiple of P (<= P-1 rows);
    # never round M up to a full tile multiple — Pallas masks the partial block.
    m_packed = pl.cdiv(m, p)
    m_rows = m_packed * p
    if m_rows != m:
        a2d = jnp.pad(a2d, ((0, m_rows - m), (0, 0)))
    a_packed = a2d.reshape(m_packed, pc)

    # Tile selection: as big as allowed (HBM-streaming kernel), rounded to the
    # dtype-dependent sublane multiple, and capped at ~half the work so v7x's
    # two TensorCores both get grid steps.  A single block equal to the full
    # dim is always a legal block shape.
    sub = _sublane(dtype)
    tile_m_eff = min(_round_up(tile_m, sub), _round_up(pl.cdiv(m_packed, 2), sub))
    if tile_m_eff >= m_packed:
        tile_m_eff = m_packed
    grid = (pl.cdiv(m_packed, tile_m_eff),)

    w_itemsize = jnp.dtype(mxu_dtype).itemsize
    cost = pl.CostEstimate(
        flops=int(2 * 2 * m_packed * pc * pc),
        transcendentals=0,
        bytes_accessed=int(2 * m_packed * pc * itemsize
                           + 2 * pc * pc * w_itemsize + 2 * pc * 4),
    )

    # Double-buffered in + out activations dominate VMEM; raise the scoped
    # limit only when a large tile would exceed the smallest (v5e) default.
    vmem_needed = (4 * tile_m_eff * pc * itemsize
                   + 4 * pc * pc * w_itemsize + 4 * pc * 4 + (1 << 20))
    compiler_params = pltpu.CompilerParams(
        dimension_semantics=("parallel",),
        vmem_limit_bytes=int(vmem_needed) if vmem_needed > (16 << 20) else None,
    )

    kernel = functools.partial(_angle_resnet_block_kernel, mxu_dtype=mxu_dtype)

    out = pl.pallas_call(
        kernel,
        out_shape=jax.ShapeDtypeStruct((m_packed, pc), dtype),
        grid_spec=pltpu.PrefetchScalarGridSpec(
            num_scalar_prefetch=0,
            grid=grid,
            in_specs=[
                pl.BlockSpec((tile_m_eff, pc), lambda i: (i, 0)),  # activations
                pl.BlockSpec((pc, pc), lambda i: (0, 0)),          # W1^T blockdiag (resident)
                pl.BlockSpec((1, pc), lambda i: (0, 0)),           # b1 (resident)
                pl.BlockSpec((pc, pc), lambda i: (0, 0)),          # W2^T blockdiag (resident)
                pl.BlockSpec((1, pc), lambda i: (0, 0)),           # b2 (resident)
            ],
            out_specs=pl.BlockSpec((tile_m_eff, pc), lambda i: (i, 0)),
        ),
        compiler_params=compiler_params,
        cost_estimate=cost,
    )(a_packed, w1_bd, b1_bd, w2_bd, b2_bd)

    out_rows = out.reshape(m_rows, c)
    if m_rows != m:
        out_rows = out_rows[:m]
    return out_rows.reshape(orig_shape)


def make_angle_resnet_block(w1, b1, w2, b2, *, tile_m=4096,
                            mxu_dtype=jnp.bfloat16):
    """Pre-packs parameters once; returns `apply(a)` (use per-layer in loops)."""
    packed = pack_angle_resnet_params(w1, b1, w2, b2, mxu_dtype=mxu_dtype)

    def apply(a):
        return _apply_packed(a, packed, tile_m=tile_m)

    return apply


def angle_resnet_block(a, w1, b1, w2, b2, *, tile_m=4096,
                       mxu_dtype=jnp.bfloat16):
    """a: (..., C);  w1, w2: (C, C) PyTorch layout (out, in);  b1, b2: (C,)."""
    packed = pack_angle_resnet_params(w1, b1, w2, b2, mxu_dtype=mxu_dtype)
    return _apply_packed(a, packed, tile_m=tile_m)


def _reference(a, w1, b1, w2, b2):
    """Pure-JAX reference mirroring the PyTorch forward (f32 math)."""
    s = a.astype(jnp.float32)
    x = jax.nn.relu(s)
    x = x @ w1.T.astype(jnp.float32) + b1
    x = jax.nn.relu(x)
    x = x @ w2.T.astype(jnp.float32) + b2
    return (x + s).astype(a.dtype)


if __name__ == "__main__":
    # Module-consistent shapes: a is (batch, seq, c_hidden).
    batch, seq, c_hidden = 2, 8, 32

    key = jax.random.PRNGKey(0)
    k_a, k_w1, k_b1, k_w2, k_b2, k_a2, k_a3, k_a4 = jax.random.split(key, 8)

    a = jax.random.normal(k_a, (batch, seq, c_hidden), jnp.float32)

    # nn.Linear(c, c): weight (out, in), bias (out,).  init='relu' (He) for
    # linear_1; linear_2's init='final' is zeros (identity block), so small
    # random values are used instead to exercise the kernel.
    he = jnp.sqrt(2.0 / c_hidden)
    w1 = jax.random.normal(k_w1, (c_hidden, c_hidden), jnp.float32) * he
    b1 = jax.random.normal(k_b1, (c_hidden,), jnp.float32) * 0.01
    w2 = jax.random.normal(k_w2, (c_hidden, c_hidden), jnp.float32) * 0.02
    b2 = jax.random.normal(k_b2, (c_hidden,), jnp.float32) * 0.01

    ref = _reference(a, w1, b1, w2, b2)

    # 1) Exact f32-MXU path.
    out = jax.block_until_ready(
        angle_resnet_block(a, w1, b1, w2, b2, mxu_dtype=jnp.float32))
    assert out.shape == a.shape and out.dtype == a.dtype
    assert jnp.allclose(out, ref, atol=1e-5, rtol=1e-5), "mismatch (f32 MXU)"

    # 2) Default bf16-MXU path (perf config) with pre-packed parameters.
    block = make_angle_resnet_block(w1, b1, w2, b2)   # mxu_dtype=bf16 default
    out_bf = jax.block_until_ready(block(a))
    assert jnp.allclose(out_bf, ref, atol=2e-2, rtol=2e-2), "mismatch (bf16 MXU)"

    # 3) Leading-dim product not divisible by the lane-pack factor (pad path).
    a2 = jax.random.normal(k_a2, (3, 7, c_hidden), jnp.float32)
    out2 = jax.block_until_ready(
        angle_resnet_block(a2, w1, b1, w2, b2, mxu_dtype=jnp.float32))
    assert out2.shape == a2.shape
    assert jnp.allclose(out2, _reference(a2, w1, b1, w2, b2),
                        atol=1e-5, rtol=1e-5), "mismatch (pad path)"

    # 4) Multi-step grid with a masked partial final block (no full-tile pad).
    a3 = jax.random.normal(k_a3, (4, 500, c_hidden), jnp.float32)
    out3 = jax.block_until_ready(
        angle_resnet_block(a3, w1, b1, w2, b2, mxu_dtype=jnp.float32, tile_m=256))
    assert jnp.allclose(out3, _reference(a3, w1, b1, w2, b2),
                        atol=1e-5, rtol=1e-5), "mismatch (partial block)"

    # 5) bf16 activations end-to-end (dtype-dependent sublane rounding).
    a4 = jax.random.normal(k_a4, (5, 9, c_hidden), jnp.float32).astype(jnp.bfloat16)
    out4 = jax.block_until_ready(block(a4))
    ref4 = _reference(a4, w1, b1, w2, b2)
    assert out4.shape == a4.shape and out4.dtype == jnp.bfloat16
    assert jnp.allclose(out4.astype(jnp.float32), ref4.astype(jnp.float32),
                        atol=3e-2, rtol=3e-2), "mismatch (bf16 activations)"

    print("KERNEL_OK")
</pallas_src>

<mosaic_0001>
module attributes {stable_mosaic.version = 11 : i64} {
  func.func @_angle_resnet_block_kernel(%arg0: i32, %arg1: memref<4x128xf32, #tpu.memory_space<vmem>>, %arg2: memref<128x128xf32, #tpu.memory_space<vmem>>, %arg3: memref<1x128xf32, #tpu.memory_space<vmem>>, %arg4: memref<128x128xf32, #tpu.memory_space<vmem>>, %arg5: memref<1x128xf32, #tpu.memory_space<vmem>>, %arg6: memref<4x128xf32, #tpu.memory_space<vmem>>) attributes {dimension_semantics = [#tpu.dimension_semantics<parallel>], iteration_bounds = array<i64: 1>, scalar_prefetch = 0 : i64, scratch_operands = 0 : i64, tpu.core_type = #tpu.core_type<tc>, window_params = [{transform_indices = @transform_0, window_bounds = array<i64: 4, 128>}, {pipeline_mode = #tpu.pipeline_mode<synchronous>, transform_indices = @transform_1, window_bounds = array<i64: 128, 128>}, {pipeline_mode = #tpu.pipeline_mode<synchronous>, transform_indices = @transform_2, window_bounds = array<i64: 1, 128>}, {pipeline_mode = #tpu.pipeline_mode<synchronous>, transform_indices = @transform_3, window_bounds = array<i64: 128, 128>}, {pipeline_mode = #tpu.pipeline_mode<synchronous>, transform_indices = @transform_4, window_bounds = array<i64: 1, 128>}, {transform_indices = @transform_5, window_bounds = array<i64: 4, 128>}]} {
    %c0 = arith.constant 0 : index
    %c0_0 = arith.constant 0 : index
    %0 = vector.load %arg1[%c0, %c0_0] : memref<4x128xf32, #tpu.memory_space<vmem>>, vector<4x128xf32>
    %cst = arith.constant 0.000000e+00 : f32
    %1 = vector.broadcast %cst : f32 to vector<4x128xf32>
    %2 = arith.maximumf %0, %1 : vector<4x128xf32>
    %c0_1 = arith.constant 0 : index
    %c0_2 = arith.constant 0 : index
    %3 = vector.load %arg2[%c0_1, %c0_2] : memref<128x128xf32, #tpu.memory_space<vmem>>, vector<128x128xf32>
    %cst_3 = arith.constant dense<0.000000e+00> : vector<4x128xf32>
    %4 = tpu.matmul %2, %3, %cst_3 {dimension_numbers = #tpu.dot_dimension_numbers<[1], [0], [0], [1], [0, 0, 1, 1], [], []>} : vector<4x128xf32>, vector<128x128xf32>, vector<4x128xf32> -> vector<4x128xf32>
    %c0_4 = arith.constant 0 : index
    %c0_5 = arith.constant 0 : index
    %5 = vector.load %arg3[%c0_4, %c0_5] : memref<1x128xf32, #tpu.memory_space<vmem>>, vector<1x128xf32>
    %6 = vector.broadcast %5 : vector<1x128xf32> to vector<4x128xf32>
    %7 = arith.addf %4, %6 : vector<4x128xf32>
    %cst_6 = arith.constant 0.000000e+00 : f32
    %8 = vector.broadcast %cst_6 : f32 to vector<4x128xf32>
    %9 = arith.maximumf %7, %8 : vector<4x128xf32>
    %c0_7 = arith.constant 0 : index
    %c0_8 = arith.constant 0 : index
    %10 = vector.load %arg4[%c0_7, %c0_8] : memref<128x128xf32, #tpu.memory_space<vmem>>, vector<128x128xf32>
    %cst_9 = arith.constant dense<0.000000e+00> : vector<4x128xf32>
    %11 = tpu.matmul %9, %10, %cst_9 {dimension_numbers = #tpu.dot_dimension_numbers<[1], [0], [0], [1], [0, 0, 1, 1], [], []>} : vector<4x128xf32>, vector<128x128xf32>, vector<4x128xf32> -> vector<4x128xf32>
    %c0_10 = arith.constant 0 : index
    %c0_11 = arith.constant 0 : index
    %12 = vector.load %arg5[%c0_10, %c0_11] : memref<1x128xf32, #tpu.memory_space<vmem>>, vector<1x128xf32>
    %13 = vector.broadcast %12 : vector<1x128xf32> to vector<4x128xf32>
    %14 = arith.addf %11, %13 : vector<4x128xf32>
    %15 = arith.addf %14, %0 : vector<4x128xf32>
    %c0_12 = arith.constant 0 : index
    %c0_13 = arith.constant 0 : index
    %16 = vector.load %arg6[%c0_12, %c0_13] : memref<4x128xf32, #tpu.memory_space<vmem>>, vector<4x128xf32>
    tpu.vector_store %arg6[%c0_12, %c0_13], %15 {strides = array<i32>} : memref<4x128xf32, #tpu.memory_space<vmem>>, vector<4x128xf32>,
    return
  }
  func.func @transform_0(%arg0: i32) -> (i32, i32) {
    %c0_i32 = arith.constant 0 : i32
    %c0_i32_0 = arith.constant 0 : i32
    return %arg0, %c0_i32 : i32, i32
  }
  func.func @transform_1(%arg0: i32) -> (i32, i32) {
    %c0_i32 = arith.constant 0 : i32
    %c0_i32_0 = arith.constant 0 : i32
    %c0_i32_1 = arith.constant 0 : i32
    return %c0_i32, %c0_i32_0 : i32, i32
  }
  func.func @transform_2(%arg0: i32) -> (i32, i32) {
    %c0_i32 = arith.constant 0 : i32
    %c0_i32_0 = arith.constant 0 : i32
    %c0_i32_1 = arith.constant 0 : i32
    return %c0_i32, %c0_i32_0 : i32, i32
  }
  func.func @transform_3(%arg0: i32) -> (i32, i32) {
    %c0_i32 = arith.constant 0 : i32
    %c0_i32_0 = arith.constant 0 : i32
    %c0_i32_1 = arith.constant 0 : i32
    return %c0_i32, %c0_i32_0 : i32, i32
  }
  func.func @transform_4(%arg0: i32) -> (i32, i32) {
    %c0_i32 = arith.constant 0 : i32
    %c0_i32_0 = arith.constant 0 : i32
    %c0_i32_1 = arith.constant 0 : i32
    return %c0_i32, %c0_i32_0 : i32, i32
  }
  func.func @transform_5(%arg0: i32) -> (i32, i32) {
    %c0_i32 = arith.constant 0 : i32
    %c0_i32_0 = arith.constant 0 : i32
    return %arg0, %c0_i32 : i32, i32
  }
}

</mosaic_0001>

<llo_original>
// kernel: tpu_custom_call.1
$region0: #{tpu_custom_call.1}
  #allocation0 [shape = 'u32[]', space=smem, size = 0x4, offset = 0x4, fixed_abs, tag = 'smem constant byte address 0x4 - core index']
  #allocation1 [shape = 'u32[72,128]{1,0:T(1,128)}', space=vmem, size = 0x9000, scoped, tag = 'internal scratch']
  %s0 = inlined_call_operand.hbm [shape: f32[4,128], index: 0, kind: input, shape index: {}]
  %s1 = inlined_call_operand.hbm [shape: f32[128,128], index: 1, kind: input, shape index: {}]
  %s2 = inlined_call_operand.vmem [shape: f32[1,128], index: 2, kind: input, shape index: {}]
  %s3 = inlined_call_operand.hbm [shape: f32[128,128], index: 3, kind: input, shape index: {}]
  %s4 = inlined_call_operand.vmem [shape: f32[1,128], index: 4, kind: input, shape index: {}]
  %s5 = inlined_call_operand.hbm [shape: f32[4,128], index: 5, kind: output, shape index: {}]
  %s6 = sld [smem:[#allocation0]]
  $region42: #{tpu_custom_call.1} parent=0
    _
  %s8 = ssub.s32 1, %s6
  %s9 = scalar_select 0, %s8, %s6
  $region1: #{tpu_custom_call.1} parent=0
    #allocation2 [shape = 'u8[2048]{0}', space=vmem, size = 0x800, scoped, tag = 'input window, operand 0, single buffered']
    #allocation3 [shape = 's32[1]{0}', space=sflag, size = 0x4, scoped, tag = 'scoped memory for tpu_custom_call.1']
    #allocation4 [shape = 's32[1]{0}', space=sflag, size = 0x4, scoped, tag = 'scoped memory for tpu_custom_call.1']
    #allocation5 [shape = 'u8[65536]{0}', space=vmem, size = 0x10000, scoped, tag = 'input window, operand 1, single buffered']
    #allocation6 [shape = 's32[1]{0}', space=sflag, size = 0x4, scoped, tag = 'scoped memory for tpu_custom_call.1']
    #allocation7 [shape = 'u8[65536]{0}', space=vmem, size = 0x10000, scoped, tag = 'input window, operand 3, single buffered']
    #allocation8 [shape = 'u8[2048]{0}', space=vmem, size = 0x800, scoped, tag = 'output window, operand 0, single buffered']
    %10 = vsyncpa [#allocation3], 0
    %11 = vsyncpa [#allocation6], 0
    %12 = vsyncpa [#allocation4], 0
    // Predicated region
    $region2: #{tpu_custom_call.1} parent=1 // pred_check
      _
    $region3: #{tpu_custom_call.1} parent=1 // pred_check_branch
      %14 = sbr.rel (0) target = $region5
    $region4: #{tpu_custom_call.1} parent=1 // pred_region
      %16 = vsyncadd [#allocation3], 0
      %s18 = sshll.u32 %s0, 4
      %s19 = int_to_ptr.hbm [resolvable:$true] %s18
      %s20 = sshll.u32 [#allocation2], 4
      %s21 = int_to_ptr.vmem [resolvable:$true] %s20
      %23 = dma.hbm_to_vmem [thread:$0]  %s19, 64, %s21, [#allocation3]
    $region5: #{tpu_custom_call.1} parent=1 // pred_fallthru
      _
    // Predicated region
    $region6: #{tpu_custom_call.1} parent=1 // pred_check
      _
    $region7: #{tpu_custom_call.1} parent=1 // pred_check_branch
      %25 = sbr.rel (0) target = $region9
    $region8: #{tpu_custom_call.1} parent=1 // pred_region
      %27 = vsyncadd [#allocation6], 0
      %s28 = sshll.u32 %s1, 4
      %s29 = int_to_ptr.hbm [resolvable:$true] %s28
      %s30 = sshll.u32 [#allocation5], 4
      %s31 = int_to_ptr.vmem [resolvable:$true] %s30
      %36 = dma.hbm_to_vmem [thread:$0]  %s29, 2048, %s31, [#allocation6], 128, 128, 8
    $region9: #{tpu_custom_call.1} parent=1 // pred_fallthru
      _
    // Predicated region
    $region10: #{tpu_custom_call.1} parent=1 // pred_check
      _
    $region11: #{tpu_custom_call.1} parent=1 // pred_check_branch
      %38 = sbr.rel (0) target = $region13
    $region12: #{tpu_custom_call.1} parent=1 // pred_region
      _
    $region13: #{tpu_custom_call.1} parent=1 // pred_fallthru
      _
    // Predicated region
    $region14: #{tpu_custom_call.1} parent=1 // pred_check
      _
    $region15: #{tpu_custom_call.1} parent=1 // pred_check_branch
      %40 = sbr.rel (0) target = $region17
    $region16: #{tpu_custom_call.1} parent=1 // pred_region
      %42 = vsyncadd [#allocation6], 0
      %s43 = sshll.u32 %s3, 4
      %s44 = int_to_ptr.hbm [resolvable:$true] %s43
      %s45 = sshll.u32 [#allocation7], 4
      %s46 = int_to_ptr.vmem [resolvable:$true] %s45
      %51 = dma.hbm_to_vmem [thread:$0]  %s44, 2048, %s46, [#allocation6], 128, 128, 8
    $region17: #{tpu_custom_call.1} parent=1 // pred_fallthru
      _
    // Predicated region
    $region18: #{tpu_custom_call.1} parent=1 // pred_check
      _
    $region19: #{tpu_custom_call.1} parent=1 // pred_check_branch
      %53 = sbr.rel (0) target = $region21
    $region20: #{tpu_custom_call.1} parent=1 // pred_region
      _
    $region21: #{tpu_custom_call.1} parent=1 // pred_fallthru
      _
    // Predicated region
    $region22: #{tpu_custom_call.1} parent=1 // pred_check
      _
    $region23: #{tpu_custom_call.1} parent=1 // pred_check_branch
      %55 = sbr.rel (0) target = $region25
    $region24: #{tpu_custom_call.1} parent=1 // pred_region
      %57 = dma.done [#allocation3], 64
    $region25: #{tpu_custom_call.1} parent=1 // pred_fallthru
      _
    // Predicated region
    $region26: #{tpu_custom_call.1} parent=1 // pred_check
      _
    $region27: #{tpu_custom_call.1} parent=1 // pred_check_branch
      %59 = sbr.rel (0) target = $region29
    $region28: #{tpu_custom_call.1} parent=1 // pred_region
      %61 = dma.done [#allocation6], 2048
    $region29: #{tpu_custom_call.1} parent=1 // pred_fallthru
      _
    // Predicated region
    $region30: #{tpu_custom_call.1} parent=1 // pred_check
      _
    $region31: #{tpu_custom_call.1} parent=1 // pred_check_branch
      %63 = sbr.rel (0) target = $region33
    $region32: #{tpu_custom_call.1} parent=1 // pred_region
      %65 = dma.done [#allocation6], 2048
    $region33: #{tpu_custom_call.1} parent=1 // pred_fallthru
      _
    %v66 = vld [vmem:[#allocation2] sm:$0xf]
    %v67 = vmax.f32 %v66, 0.0
    %v68 = vld [vmem:[#allocation5] sm:$0xff]
    %v69 = vld [vmem:[#allocation5 + $0x8] sm:$0xff]
    %v70 = vld [vmem:[#allocation5 + $0x10] sm:$0xff]
    %v71 = vld [vmem:[#allocation5 + $0x18] sm:$0xff]
    %v72 = vld [vmem:[#allocation5 + $0x20] sm:$0xff]
    %v73 = vld [vmem:[#allocation5 + $0x28] sm:$0xff]
    %v74 = vld [vmem:[#allocation5 + $0x30] sm:$0xff]
    %v75 = vld [vmem:[#allocation5 + $0x38] sm:$0xff]
    %v76 = vld [vmem:[#allocation5 + $0x40] sm:$0xff]
    %v77 = vld [vmem:[#allocation5 + $0x48] sm:$0xff]
    %v78 = vld [vmem:[#allocation5 + $0x50] sm:$0xff]
    %v79 = vld [vmem:[#allocation5 + $0x58] sm:$0xff]
    %v80 = vld [vmem:[#allocation5 + $0x60] sm:$0xff]
    %v81 = vld [vmem:[#allocation5 + $0x68] sm:$0xff]
    %v82 = vld [vmem:[#allocation5 + $0x70] sm:$0xff]
    %v83 = vld [vmem:[#allocation5 + $0x78] sm:$0xff]
    %v84 = vld [vmem:[%s2] sm:$0x1]
    %v86 = vperm.slane %v84, 0
    %88 = vmatpush.msra.mxu0 %v83
    %89 = vmatpush.msra.mxu0 %v82
    %90 = vmatpush.msra.mxu0 %v81
    %91 = vmatpush.msra.mxu0 %v80
    %92 = vmatpush.msra.mxu0 %v79
    %93 = vmatpush.msra.mxu0 %v78
    %94 = vmatpush.msra.mxu0 %v77
    %95 = vmatpush.msra.mxu0 %v76
    %96 = vmatpush.msra.mxu0 %v75
    %97 = vmatpush.msra.mxu0 %v74
    %98 = vmatpush.msra.mxu0 %v73
    %99 = vmatpush.msra.mxu0 %v72
    %100 = vmatpush.msra.mxu0 %v71
    %101 = vmatpush.msra.mxu0 %v70
    %102 = vmatpush.msra.mxu0 %v69
    %103 = vmatpush.msra.mxu0 %v68
    %104 = vmatmul.f32.gmra.mxu0 %v67
    %v105 = vpop.f32.mrf.mxu0
    %v106 = vadd.f32 %v86, %v105
    %107 = vdwg.mxu0
    %v108 = vmax.f32 %v106, 0.0
    %v109 = vld [vmem:[#allocation7] sm:$0xff]
    %v110 = vld [vmem:[#allocation7 + $0x8] sm:$0xff]
    %v111 = vld [vmem:[#allocation7 + $0x10] sm:$0xff]
    %v112 = vld [vmem:[#allocation7 + $0x18] sm:$0xff]
    %v113 = vld [vmem:[#allocation7 + $0x20] sm:$0xff]
    %v114 = vld [vmem:[#allocation7 + $0x28] sm:$0xff]
    %v115 = vld [vmem:[#allocation7 + $0x30] sm:$0xff]
    %v116 = vld [vmem:[#allocation7 + $0x38] sm:$0xff]
    %v117 = vld [vmem:[#allocation7 + $0x40] sm:$0xff]
    %v118 = vld [vmem:[#allocation7 + $0x48] sm:$0xff]
    %v119 = vld [vmem:[#allocation7 + $0x50] sm:$0xff]
    %v120 = vld [vmem:[#allocation7 + $0x58] sm:$0xff]
    %v121 = vld [vmem:[#allocation7 + $0x60] sm:$0xff]
    %v122 = vld [vmem:[#allocation7 + $0x68] sm:$0xff]
    %v123 = vld [vmem:[#allocation7 + $0x70] sm:$0xff]
    %v124 = vld [vmem:[#allocation7 + $0x78] sm:$0xff]
    %v125 = vld [vmem:[%s4] sm:$0x1]
    %v127 = vperm.slane %v125, 0
    %129 = vmatpush.msra.mxu0 %v124
    %130 = vmatpush.msra.mxu0 %v123
    %131 = vmatpush.msra.mxu0 %v122
    %132 = vmatpush.msra.mxu0 %v121
    %133 = vmatpush.msra.mxu0 %v120
    %134 = vmatpush.msra.mxu0 %v119
    %135 = vmatpush.msra.mxu0 %v118
    %136 = vmatpush.msra.mxu0 %v117
    %137 = vmatpush.msra.mxu0 %v116
    %138 = vmatpush.msra.mxu0 %v115
    %139 = vmatpush.msra.mxu0 %v114
    %140 = vmatpush.msra.mxu0 %v113
    %141 = vmatpush.msra.mxu0 %v112
    %142 = vmatpush.msra.mxu0 %v111
    %143 = vmatpush.msra.mxu0 %v110
    %144 = vmatpush.msra.mxu0 %v109
    %145 = vmatmul.f32.gmra.mxu0 %v108
    %v146 = vpop.f32.mrf.mxu0
    %v147 = vadd.f32 %v127, %v146
    %148 = vdwg.mxu0
    %v149 = vadd.f32 %v147, %v66
    %150 = vst [vmem:[#allocation8] sm:$0xf] %v149
    // Predicated region
    $region34: #{tpu_custom_call.1} parent=1 // pred_check
      _
    $region35: #{tpu_custom_call.1} parent=1 // pred_check_branch
      %152 = sbr.rel (0) target = $region37
    $region36: #{tpu_custom_call.1} parent=1 // pred_region
      %154 = vsyncadd [#allocation4], 0
      %s156 = sshll.u32 [#allocation8], 4
      %s157 = int_to_ptr.vmem [resolvable:$true] %s156
      %s158 = sshll.u32 %s5, 4
      %s159 = int_to_ptr.hbm [resolvable:$true] %s158
      %161 = dma.vmem_to_hbm [thread:$0]  %s157, 64, %s159, [#allocation4]
    $region37: #{tpu_custom_call.1} parent=1 // pred_fallthru
      _
    // Predicated region
    $region38: #{tpu_custom_call.1} parent=1 // pred_check
      _
    $region39: #{tpu_custom_call.1} parent=1 // pred_check_branch
      %163 = sbr.rel (0) target = $region41
    $region40: #{tpu_custom_call.1} parent=1 // pred_region
      %165 = dma.done [#allocation4], 64
    $region41: #{tpu_custom_call.1} parent=1 // pred_fallthru
      _
    %166 = vsyncpa [#allocation3], 1
    %167 = vsyncpa [#allocation6], 1
    %168 = vsyncpa [#allocation4], 1

</llo_original>
